<compile_context>
chip_gen: v7x
topology: tpu7x:2x2x1
jax: 0.10.0
libtpu: 0.0.40
codegen_flags: <defaults>
</compile_context>

<pallas_src>
import jax
import jax.numpy as jnp
from jax.experimental import pallas as pl
from jax.experimental.pallas import tpu as pltpu

EPS = 1e-5


def mlp_kernel(x_ref, w1_ref, w2_ref, w3_ref, vec_ref, out_ref):
    """Single fused block: x @ w1 -> BN -> ReLU -> @ w2 -> BN -> ReLU -> @ w3.

    vec_ref packs the per-feature row vectors (f32), rows:
      0: b1   1: g1   2: beta1   3: b2   4: g2   5: beta2   6: b3(padded)  7: 0
    """
    hidden = w1_ref.shape[1]
    out_pad = out_ref.shape[1]
    inv_b = 1.0 / x_ref.shape[0]  # static batch size

    def linear(h, w_ref, bias):
        # Cast matmul inputs to the (bf16 by default) weight dtype for the MXU;
        # accumulate in f32.  bias is an f32 [1, F] row.
        return jnp.dot(h.astype(w_ref.dtype), w_ref[...],
                       preferred_element_type=jnp.float32) + bias

    def bn_relu(h, gamma, beta):
        # Two-pass batch statistics (PyTorch train-mode BN, biased variance).
        mean = jnp.sum(h, axis=0, keepdims=True) * inv_b          # [1, F]
        c = h - mean
        var = jnp.sum(c * c, axis=0, keepdims=True) * inv_b       # [1, F]
        # Fold BN into a single per-feature scale/shift (rsqrt goes to the EUP).
        scale = gamma * jax.lax.rsqrt(var + EPS)                  # [1, F]
        shift = beta - mean * scale                               # [1, F]
        # Only fused scale/shift + ReLU on the [B, F] tile (all f32, v5e-safe).
        return jnp.maximum(h * scale + shift, 0.0)

    b1 = vec_ref[0:1, :hidden]
    g1 = vec_ref[1:2, :hidden]
    be1 = vec_ref[2:3, :hidden]
    b2 = vec_ref[3:4, :hidden]
    g2 = vec_ref[4:5, :hidden]
    be2 = vec_ref[5:6, :hidden]
    b3 = vec_ref[6:7, :out_pad]

    h = bn_relu(linear(x_ref[...], w1_ref, b1), g1, be1)
    h = bn_relu(linear(h, w2_ref, b2), g2, be2)
    # Lane-dense (padded to a multiple of 128) unmasked store.
    out_ref[...] = linear(h, w3_ref, b3).astype(out_ref.dtype)


def neural_network_forward(x, params, *, weights_dtype=jnp.bfloat16):
    """x: [B, D_in] float32.  params: dict of weights (see init_params).

    weights_dtype=jnp.bfloat16 (default) halves weight HBM->VMEM traffic and
    feeds the bf16 MXU on all generations; numerics then deviate at bf16
    matmul precision (flows through BN batch stats).  Pass jnp.float32 for
    exact torch-f32 matching.
    """
    B, in_size = x.shape
    hidden = params["w1"].shape[1]
    out_size = params["w3"].shape[1]
    out_pad = max(128, ((out_size + 127) // 128) * 128)
    vec_w = max(hidden, out_pad)

    # Zero-pad the final layer so the output block is lane-dense ([B, 128k]).
    w3 = params["w3"]
    if out_pad != out_size:
        w3 = jnp.pad(w3, ((0, 0), (0, out_pad - out_size)))

    def row(v, width):
        v = v.reshape(1, -1).astype(jnp.float32)
        return jnp.pad(v, ((0, 0), (0, width - v.shape[1])))

    # Pack all per-feature vectors into one sublane-aligned [8, vec_w] operand
    # (single DMA instead of 7 tiny, 8-sublane-padded ones).
    vec_pack = jnp.concatenate(
        [row(params["b1"], vec_w), row(params["g1"], vec_w),
         row(params["beta1"], vec_w), row(params["b2"], vec_w),
         row(params["g2"], vec_w), row(params["beta2"], vec_w),
         row(params["b3"], vec_w), jnp.zeros((1, vec_w), jnp.float32)],
        axis=0)

    wd = weights_dtype
    operands = (
        x,
        params["w1"].astype(wd),
        params["w2"].astype(wd),
        w3.astype(wd),
        vec_pack,
    )

    # Whole-array VMEM blocks; no grid needed at these shapes.
    in_specs = [pl.BlockSpec(memory_space=pltpu.MemorySpace.VMEM)
                for _ in operands]
    out_spec = pl.BlockSpec(memory_space=pltpu.MemorySpace.VMEM)

    flops = 2 * B * (in_size * hidden + hidden * hidden + hidden * out_pad)
    bytes_accessed = (sum(int(op.size) * op.dtype.itemsize for op in operands)
                      + B * out_pad * 4)

    out = pl.pallas_call(
        mlp_kernel,
        out_shape=jax.ShapeDtypeStruct((B, out_pad), jnp.float32),
        in_specs=in_specs,
        out_specs=out_spec,
        compiler_params=pltpu.CompilerParams(vmem_limit_bytes=8 << 20),
        cost_estimate=pl.CostEstimate(flops=flops,
                                      transcendentals=2 * hidden,
                                      bytes_accessed=bytes_accessed),
    )(*operands)

    return out[:, :out_size]


def init_params(key, in_size, hidden, out_size):
    """Deterministic synthetic parameter init (shapes follow the nn.Sequential)."""
    ks = jax.random.split(key, 6)
    scale1 = 1.0 / jnp.sqrt(in_size)
    scale2 = 1.0 / jnp.sqrt(hidden)
    params = {
        # Linear weights stored as [in, out] (transposed vs torch's [out, in]).
        "w1": jax.random.uniform(ks[0], (in_size, hidden), jnp.float32, -scale1, scale1),
        "b1": jax.random.uniform(ks[1], (1, hidden), jnp.float32, -scale1, scale1),
        "g1": jnp.ones((1, hidden), jnp.float32),
        "beta1": jnp.zeros((1, hidden), jnp.float32),
        "w2": jax.random.uniform(ks[2], (hidden, hidden), jnp.float32, -scale2, scale2),
        "b2": jax.random.uniform(ks[3], (1, hidden), jnp.float32, -scale2, scale2),
        "g2": jnp.ones((1, hidden), jnp.float32),
        "beta2": jnp.zeros((1, hidden), jnp.float32),
        "w3": jax.random.uniform(ks[4], (hidden, out_size), jnp.float32, -scale2, scale2),
        "b3": jax.random.uniform(ks[5], (1, out_size), jnp.float32, -scale2, scale2),
    }
    return params


def reference_forward(x, p, matmul_dtype=jnp.float32):
    """Pure-JAX reference (PyTorch train-mode BN semantics, two-pass variance)."""
    def lin(a, w, b):
        return jnp.dot(a.astype(matmul_dtype), w.astype(matmul_dtype),
                       preferred_element_type=jnp.float32) + b

    def bn(h, g, b):
        m = jnp.mean(h, axis=0, keepdims=True)
        v = jnp.mean((h - m) ** 2, axis=0, keepdims=True)
        return (h - m) / jnp.sqrt(v + EPS) * g + b

    h = jnp.maximum(bn(lin(x, p["w1"], p["b1"]), p["g1"], p["beta1"]), 0.0)
    h = jnp.maximum(bn(lin(h, p["w2"], p["b2"]), p["g2"], p["beta2"]), 0.0)
    return lin(h, p["w3"], p["b3"])


if __name__ == "__main__":
    # Shapes consistent with the module: dataloader batch of 16, tabular
    # features, hidden=256 (fixed by the nn.Sequential), out_size classes.
    B, IN_SIZE, HIDDEN, OUT_SIZE = 16, 32, 256, 10

    key = jax.random.PRNGKey(0)
    kx, kp = jax.random.split(key)
    x = jax.random.normal(kx, (B, IN_SIZE), dtype=jnp.float32)
    params = init_params(kp, IN_SIZE, HIDDEN, OUT_SIZE)

    # 1) f32-weight path: exact module semantics.
    logits_f32 = jax.block_until_ready(
        neural_network_forward(x, params, weights_dtype=jnp.float32))
    ref_f32 = reference_forward(x, params)
    assert logits_f32.shape == (B, OUT_SIZE)
    assert jnp.allclose(logits_f32, ref_f32, atol=1e-4, rtol=1e-4), \
        "f32 mismatch vs reference"

    # 2) Non-zero-mean inputs exercise the two-pass BN variance path.
    x_shift = x + 5.0
    logits_shift = jax.block_until_ready(
        neural_network_forward(x_shift, params, weights_dtype=jnp.float32))
    ref_shift = reference_forward(x_shift, params)
    assert jnp.allclose(logits_shift, ref_shift, atol=1e-4, rtol=1e-4), \
        "f32 mismatch vs reference (shifted inputs)"

    # 3) Default bf16-weight path (DMA/MXU optimization on all generations).
    #    Compared against a reference applying the same bf16 matmul-input casts;
    #    deviation vs the torch f32 module is at bf16 matmul precision.
    logits_bf16 = jax.block_until_ready(neural_network_forward(x, params))
    ref_bf16 = reference_forward(x, params, matmul_dtype=jnp.bfloat16)
    assert logits_bf16.shape == (B, OUT_SIZE)
    assert jnp.allclose(logits_bf16, ref_bf16, atol=2e-3, rtol=2e-3), \
        "bf16 mismatch vs bf16 reference"

    print("KERNEL_OK")
</pallas_src>

<mosaic_0001>
module attributes {stable_mosaic.version = 11 : i64} {
  func.func @mlp_kernel(%arg0: memref<16x32xf32, #tpu.memory_space<vmem>>, %arg1: memref<32x256xf32, #tpu.memory_space<vmem>>, %arg2: memref<256x256xf32, #tpu.memory_space<vmem>>, %arg3: memref<256x128xf32, #tpu.memory_space<vmem>>, %arg4: memref<8x256xf32, #tpu.memory_space<vmem>>, %arg5: memref<16x128xf32, #tpu.memory_space<vmem>>) attributes {dimension_semantics = [], scalar_prefetch = 0 : i64, scratch_operands = 0 : i64, tpu.core_type = #tpu.core_type<tc>} {
    %c0 = arith.constant 0 : index
    %c0_0 = arith.constant 0 : index
    %0 = vector.load %arg4[%c0, %c0_0] : memref<8x256xf32, #tpu.memory_space<vmem>>, vector<1x256xf32>
    %c1 = arith.constant 1 : index
    %c0_1 = arith.constant 0 : index
    %1 = vector.load %arg4[%c1, %c0_1] : memref<8x256xf32, #tpu.memory_space<vmem>>, vector<1x256xf32>
    %c2 = arith.constant 2 : index
    %c0_2 = arith.constant 0 : index
    %2 = vector.load %arg4[%c2, %c0_2] : memref<8x256xf32, #tpu.memory_space<vmem>>, vector<1x256xf32>
    %c3 = arith.constant 3 : index
    %c0_3 = arith.constant 0 : index
    %3 = vector.load %arg4[%c3, %c0_3] : memref<8x256xf32, #tpu.memory_space<vmem>>, vector<1x256xf32>
    %c4 = arith.constant 4 : index
    %c0_4 = arith.constant 0 : index
    %4 = vector.load %arg4[%c4, %c0_4] : memref<8x256xf32, #tpu.memory_space<vmem>>, vector<1x256xf32>
    %c5 = arith.constant 5 : index
    %c0_5 = arith.constant 0 : index
    %5 = vector.load %arg4[%c5, %c0_5] : memref<8x256xf32, #tpu.memory_space<vmem>>, vector<1x256xf32>
    %c6 = arith.constant 6 : index
    %c0_6 = arith.constant 0 : index
    %6 = vector.load %arg4[%c6, %c0_6] : memref<8x256xf32, #tpu.memory_space<vmem>>, vector<1x128xf32>
    %c0_7 = arith.constant 0 : index
    %c0_8 = arith.constant 0 : index
    %7 = vector.load %arg0[%c0_7, %c0_8] : memref<16x32xf32, #tpu.memory_space<vmem>>, vector<16x32xf32>
    %c0_9 = arith.constant 0 : index
    %c0_10 = arith.constant 0 : index
    %8 = vector.load %arg1[%c0_9, %c0_10] : memref<32x256xf32, #tpu.memory_space<vmem>>, vector<32x256xf32>
    %cst = arith.constant dense<0.000000e+00> : vector<16x256xf32>
    %9 = tpu.matmul %7, %8, %cst {dimension_numbers = #tpu.dot_dimension_numbers<[1], [0], [0], [1], [0, 0, 1, 1], [], []>} : vector<16x32xf32>, vector<32x256xf32>, vector<16x256xf32> -> vector<16x256xf32>
    %10 = vector.broadcast %0 : vector<1x256xf32> to vector<16x256xf32>
    %11 = arith.addf %9, %10 : vector<16x256xf32>
    %cst_11 = arith.constant dense<0.000000e+00> : vector<256xf32>
    %12 = vector.multi_reduction <add>, %11, %cst_11 [0] : vector<16x256xf32> to vector<256xf32>
    %13 = vector.shape_cast %12 : vector<256xf32> to vector<1x256xf32>
    %cst_12 = arith.constant 6.250000e-02 : f32
    %14 = vector.broadcast %cst_12 : f32 to vector<1x256xf32>
    %15 = arith.mulf %13, %14 : vector<1x256xf32>
    %16 = vector.broadcast %15 : vector<1x256xf32> to vector<16x256xf32>
    %17 = arith.subf %11, %16 : vector<16x256xf32>
    %18 = arith.mulf %17, %17 : vector<16x256xf32>
    %cst_13 = arith.constant dense<0.000000e+00> : vector<256xf32>
    %19 = vector.multi_reduction <add>, %18, %cst_13 [0] : vector<16x256xf32> to vector<256xf32>
    %20 = vector.shape_cast %19 : vector<256xf32> to vector<1x256xf32>
    %cst_14 = arith.constant 6.250000e-02 : f32
    %21 = vector.broadcast %cst_14 : f32 to vector<1x256xf32>
    %22 = arith.mulf %20, %21 : vector<1x256xf32>
    %cst_15 = arith.constant 9.99999974E-6 : f32
    %23 = vector.broadcast %cst_15 : f32 to vector<1x256xf32>
    %24 = arith.addf %22, %23 : vector<1x256xf32>
    %25 = math.rsqrt %24 : vector<1x256xf32>
    %26 = arith.mulf %1, %25 : vector<1x256xf32>
    %27 = arith.mulf %15, %26 : vector<1x256xf32>
    %28 = arith.subf %2, %27 : vector<1x256xf32>
    %29 = vector.broadcast %26 : vector<1x256xf32> to vector<16x256xf32>
    %30 = arith.mulf %11, %29 : vector<16x256xf32>
    %31 = vector.broadcast %28 : vector<1x256xf32> to vector<16x256xf32>
    %32 = arith.addf %30, %31 : vector<16x256xf32>
    %cst_16 = arith.constant 0.000000e+00 : f32
    %33 = vector.broadcast %cst_16 : f32 to vector<16x256xf32>
    %34 = arith.maximumf %32, %33 : vector<16x256xf32>
    %c0_17 = arith.constant 0 : index
    %c0_18 = arith.constant 0 : index
    %35 = vector.load %arg2[%c0_17, %c0_18] : memref<256x256xf32, #tpu.memory_space<vmem>>, vector<256x256xf32>
    %cst_19 = arith.constant dense<0.000000e+00> : vector<16x256xf32>
    %36 = tpu.matmul %34, %35, %cst_19 {dimension_numbers = #tpu.dot_dimension_numbers<[1], [0], [0], [1], [0, 0, 1, 1], [], []>} : vector<16x256xf32>, vector<256x256xf32>, vector<16x256xf32> -> vector<16x256xf32>
    %37 = vector.broadcast %3 : vector<1x256xf32> to vector<16x256xf32>
    %38 = arith.addf %36, %37 : vector<16x256xf32>
    %cst_20 = arith.constant dense<0.000000e+00> : vector<256xf32>
    %39 = vector.multi_reduction <add>, %38, %cst_20 [0] : vector<16x256xf32> to vector<256xf32>
    %40 = vector.shape_cast %39 : vector<256xf32> to vector<1x256xf32>
    %cst_21 = arith.constant 6.250000e-02 : f32
    %41 = vector.broadcast %cst_21 : f32 to vector<1x256xf32>
    %42 = arith.mulf %40, %41 : vector<1x256xf32>
    %43 = vector.broadcast %42 : vector<1x256xf32> to vector<16x256xf32>
    %44 = arith.subf %38, %43 : vector<16x256xf32>
    %45 = arith.mulf %44, %44 : vector<16x256xf32>
    %cst_22 = arith.constant dense<0.000000e+00> : vector<256xf32>
    %46 = vector.multi_reduction <add>, %45, %cst_22 [0] : vector<16x256xf32> to vector<256xf32>
    %47 = vector.shape_cast %46 : vector<256xf32> to vector<1x256xf32>
    %cst_23 = arith.constant 6.250000e-02 : f32
    %48 = vector.broadcast %cst_23 : f32 to vector<1x256xf32>
    %49 = arith.mulf %47, %48 : vector<1x256xf32>
    %cst_24 = arith.constant 9.99999974E-6 : f32
    %50 = vector.broadcast %cst_24 : f32 to vector<1x256xf32>
    %51 = arith.addf %49, %50 : vector<1x256xf32>
    %52 = math.rsqrt %51 : vector<1x256xf32>
    %53 = arith.mulf %4, %52 : vector<1x256xf32>
    %54 = arith.mulf %42, %53 : vector<1x256xf32>
    %55 = arith.subf %5, %54 : vector<1x256xf32>
    %56 = vector.broadcast %53 : vector<1x256xf32> to vector<16x256xf32>
    %57 = arith.mulf %38, %56 : vector<16x256xf32>
    %58 = vector.broadcast %55 : vector<1x256xf32> to vector<16x256xf32>
    %59 = arith.addf %57, %58 : vector<16x256xf32>
    %cst_25 = arith.constant 0.000000e+00 : f32
    %60 = vector.broadcast %cst_25 : f32 to vector<16x256xf32>
    %61 = arith.maximumf %59, %60 : vector<16x256xf32>
    %c0_26 = arith.constant 0 : index
    %c0_27 = arith.constant 0 : index
    %62 = vector.load %arg3[%c0_26, %c0_27] : memref<256x128xf32, #tpu.memory_space<vmem>>, vector<256x128xf32>
    %cst_28 = arith.constant dense<0.000000e+00> : vector<16x128xf32>
    %63 = tpu.matmul %61, %62, %cst_28 {dimension_numbers = #tpu.dot_dimension_numbers<[1], [0], [0], [1], [0, 0, 1, 1], [], []>} : vector<16x256xf32>, vector<256x128xf32>, vector<16x128xf32> -> vector<16x128xf32>
    %64 = vector.broadcast %6 : vector<1x128xf32> to vector<16x128xf32>
    %65 = arith.addf %63, %64 : vector<16x128xf32>
    %c0_29 = arith.constant 0 : index
    %c0_30 = arith.constant 0 : index
    %66 = vector.load %arg5[%c0_29, %c0_30] : memref<16x128xf32, #tpu.memory_space<vmem>>, vector<16x128xf32>
    tpu.vector_store %arg5[%c0_29, %c0_30], %65 {strides = array<i32>} : memref<16x128xf32, #tpu.memory_space<vmem>>, vector<16x128xf32>,
    return
  }
}

</mosaic_0001>

<llo_original>
// kernel: tpu_custom_call.1
$region0: #{tpu_custom_call.1}
  #allocation0 [shape = 'u32[]', space=smem, size = 0x4, offset = 0x4, fixed_abs, tag = 'smem constant byte address 0x4 - core index']
  #allocation1 [shape = 'u32[144,128]{1,0:T(1,128)}', space=vmem, size = 0x12000, scoped, tag = 'internal scratch']
  %s0 = inlined_call_operand.hbm [shape: f32[16,32], index: 0, kind: input, shape index: {}]
  %s1 = inlined_call_operand.hbm [shape: f32[32,256], index: 1, kind: input, shape index: {}]
  %s2 = inlined_call_operand.hbm [shape: f32[256,256], index: 2, kind: input, shape index: {}]
  %s3 = inlined_call_operand.hbm [shape: f32[256,128], index: 3, kind: input, shape index: {}]
  %s4 = inlined_call_operand.hbm [shape: f32[8,256], index: 4, kind: input, shape index: {}]
  %s5 = inlined_call_operand.hbm [shape: f32[16,128], index: 5, kind: output, shape index: {}]
  %s6 = sld [smem:[#allocation0]]
  $region50: #{tpu_custom_call.1} parent=0
    _
  %s8 = ssub.s32 1, %s6
  %s9 = scalar_select 0, %s8, %s6
  $region1: #{tpu_custom_call.1} parent=0
    #allocation2 [shape = 'u8[8192]{0}', space=vmem, size = 0x2000, scoped, tag = 'input window, operand 0, single buffered']
    #allocation3 [shape = 's32[1]{0}', space=sflag, size = 0x4, scoped, tag = 'scoped memory for tpu_custom_call.1']
    #allocation4 [shape = 's32[1]{0}', space=sflag, size = 0x4, scoped, tag = 'scoped memory for tpu_custom_call.1']
    #allocation5 [shape = 'u8[32768]{0}', space=vmem, size = 0x8000, scoped, tag = 'input window, operand 1, single buffered']
    #allocation6 [shape = 's32[1]{0}', space=sflag, size = 0x4, scoped, tag = 'scoped memory for tpu_custom_call.1']
    #allocation7 [shape = 'u8[262144]{0}', space=vmem, size = 0x40000, scoped, tag = 'input window, operand 2, single buffered']
    #allocation8 [shape = 'u8[131072]{0}', space=vmem, size = 0x20000, scoped, tag = 'input window, operand 3, single buffered']
    #allocation9 [shape = 's32[1]{0}', space=sflag, size = 0x4, scoped, tag = 'scoped memory for tpu_custom_call.1']
    #allocation10 [shape = 'u8[8192]{0}', space=vmem, size = 0x2000, scoped, tag = 'input window, operand 4, single buffered']
    #allocation11 [shape = 'u8[8192]{0}', space=vmem, size = 0x2000, scoped, tag = 'output window, operand 0, single buffered']
    %10 = vsyncpa [#allocation3], 0
    %11 = vsyncpa [#allocation6], 0
    %12 = vsyncpa [#allocation9], 0
    %13 = vsyncpa [#allocation4], 0
    // Predicated region
    $region2: #{tpu_custom_call.1} parent=1 // pred_check
      _
    $region3: #{tpu_custom_call.1} parent=1 // pred_check_branch
      %15 = sbr.rel (0) target = $region5
    $region4: #{tpu_custom_call.1} parent=1 // pred_region
      %s17 = ssub.s32 256, 256
      %18 = vsyncadd [#allocation3], %s17
      %s19 = sshll.u32 [#allocation2], 4
      %s20 = int_to_ptr.vmem [resolvable:$true] %s19
      %25 = dma.hbm_to_vmem [thread:$0]  %s0, 256, %s20, [#allocation3], 128, 128, 8
    $region5: #{tpu_custom_call.1} parent=1 // pred_fallthru
      _
    // Predicated region
    $region6: #{tpu_custom_call.1} parent=1 // pred_check
      _
    $region7: #{tpu_custom_call.1} parent=1 // pred_check_branch
      %27 = sbr.rel (0) target = $region9
    $region8: #{tpu_custom_call.1} parent=1 // pred_region
      %s29 = ssub.s32 1024, 1024
      %30 = vsyncadd [#allocation6], %s29
      %s31 = sshll.u32 [#allocation5], 4
      %s32 = int_to_ptr.vmem [resolvable:$true] %s31
      %37 = dma.hbm_to_vmem [thread:$0]  %s1, 1024, %s32, [#allocation6], 256, 256, 16
    $region9: #{tpu_custom_call.1} parent=1 // pred_fallthru
      _
    // Predicated region
    $region10: #{tpu_custom_call.1} parent=1 // pred_check
      _
    $region11: #{tpu_custom_call.1} parent=1 // pred_check_branch
      %39 = sbr.rel (0) target = $region13
    $region12: #{tpu_custom_call.1} parent=1 // pred_region
      %s41 = ssub.s32 8192, 8192
      %42 = vsyncadd [#allocation6], %s41
      %s43 = sshll.u32 [#allocation7], 4
      %s44 = int_to_ptr.vmem [resolvable:$true] %s43
      %49 = dma.hbm_to_vmem [thread:$0]  %s2, 8192, %s44, [#allocation6], 256, 256, 16
    $region13: #{tpu_custom_call.1} parent=1 // pred_fallthru
      _
    // Predicated region
    $region14: #{tpu_custom_call.1} parent=1 // pred_check
      _
    $region15: #{tpu_custom_call.1} parent=1 // pred_check_branch
      %51 = sbr.rel (0) target = $region17
    $region16: #{tpu_custom_call.1} parent=1 // pred_region
      %s53 = ssub.s32 4096, 4096
      %54 = vsyncadd [#allocation9], %s53
      %s55 = sshll.u32 [#allocation8], 4
      %s56 = int_to_ptr.vmem [resolvable:$true] %s55
      %61 = dma.hbm_to_vmem [thread:$0]  %s3, 4096, %s56, [#allocation9], 128, 128, 8
    $region17: #{tpu_custom_call.1} parent=1 // pred_fallthru
      _
    // Predicated region
    $region18: #{tpu_custom_call.1} parent=1 // pred_check
      _
    $region19: #{tpu_custom_call.1} parent=1 // pred_check_branch
      %63 = sbr.rel (0) target = $region21
    $region20: #{tpu_custom_call.1} parent=1 // pred_region
      %s65 = ssub.s32 256, 256
      %66 = vsyncadd [#allocation9], %s65
      %s68 = sshll.u32 [#allocation10], 4
      %s69 = int_to_ptr.vmem [resolvable:$true] %s68
      %71 = dma.hbm_to_vmem [thread:$0]  %s4, 256, %s69, [#allocation9]
    $region21: #{tpu_custom_call.1} parent=1 // pred_fallthru
      _
    // Predicated region
    $region22: #{tpu_custom_call.1} parent=1 // pred_check
      _
    $region23: #{tpu_custom_call.1} parent=1 // pred_check_branch
      %73 = sbr.rel (0) target = $region25
    $region24: #{tpu_custom_call.1} parent=1 // pred_region
      %74 = dma.done [#allocation3], 256
    $region25: #{tpu_custom_call.1} parent=1 // pred_fallthru
      _
    // Predicated region
    $region26: #{tpu_custom_call.1} parent=1 // pred_check
      _
    $region27: #{tpu_custom_call.1} parent=1 // pred_check_branch
      %76 = sbr.rel (0) target = $region29
    $region28: #{tpu_custom_call.1} parent=1 // pred_region
      %77 = dma.done [#allocation6], 1024
    $region29: #{tpu_custom_call.1} parent=1 // pred_fallthru
      _
    // Predicated region
    $region30: #{tpu_custom_call.1} parent=1 // pred_check
      _
    $region31: #{tpu_custom_call.1} parent=1 // pred_check_branch
      %79 = sbr.rel (0) target = $region33
    $region32: #{tpu_custom_call.1} parent=1 // pred_region
      %80 = dma.done [#allocation6], 8192
    $region33: #{tpu_custom_call.1} parent=1 // pred_fallthru
      _
    // Predicated region
    $region34: #{tpu_custom_call.1} parent=1 // pred_check
      _
    $region35: #{tpu_custom_call.1} parent=1 // pred_check_branch
      %82 = sbr.rel (0) target = $region37
    $region36: #{tpu_custom_call.1} parent=1 // pred_region
      %83 = dma.done [#allocation9], 4096
    $region37: #{tpu_custom_call.1} parent=1 // pred_fallthru
      _
    // Predicated region
    $region38: #{tpu_custom_call.1} parent=1 // pred_check
      _
    $region39: #{tpu_custom_call.1} parent=1 // pred_check_branch
      %85 = sbr.rel (0) target = $region41
    $region40: #{tpu_custom_call.1} parent=1 // pred_region
      %86 = dma.done [#allocation9], 256
    $region41: #{tpu_custom_call.1} parent=1 // pred_fallthru
      _
    %v87 = vld [vmem:[#allocation10] ss:$8 sm:$0x3]
    %s88 = scalar_lea.vmem [#allocation10], 1
    %v89 = vld [vmem:[%s88] ss:$8 sm:$0x3]
    %s90 = scalar_lea.vmem [#allocation10], 2
    %v91 = vld [vmem:[%s90] ss:$8 sm:$0x3]
    %s92 = scalar_lea.vmem [#allocation10], 3
    %v93 = vld [vmem:[%s92] ss:$8 sm:$0x3]
    %s94 = scalar_lea.vmem [#allocation10], 4
    %v95 = vld [vmem:[%s94] ss:$8 sm:$0x3]
    %s96 = scalar_lea.vmem [#allocation10], 5
    %v97 = vld [vmem:[%s96] ss:$8 sm:$0x3]
    %v98 = vld [vmem:[#allocation10 + $0x6] ss:$0 sm:$0xff]
    %v99 = vld [vmem:[#allocation2] sm:$0xff]
    %v100 = vld [vmem:[#allocation2 + $0x8] sm:$0xff]
    %v101 = vld [vmem:[#allocation5] sm:$0xff]
    %v102 = vld [vmem:[#allocation5 + $0x8] sm:$0xff]
    %v103 = vld [vmem:[#allocation5 + $0x10] sm:$0xff]
    %v104 = vld [vmem:[#allocation5 + $0x18] sm:$0xff]
    %v105 = vld [vmem:[#allocation5 + $0x20] sm:$0xff]
    %v106 = vld [vmem:[#allocation5 + $0x28] sm:$0xff]
    %v107 = vld [vmem:[#allocation5 + $0x30] sm:$0xff]
    %v108 = vld [vmem:[#allocation5 + $0x38] sm:$0xff]
    %v110 = vlaneseq
    %v111 = vshrl.u32 %v110, 7
    %v112 = vsub.s32 0, %v111
    %v113 = vrot.slane %v87, %v112
    %v114 = vlaneseq
    %v115 = vshrl.u32 %v114, 7
    %v116 = vsub.s32 1, %v115
    %v117 = vrot.slane %v87, %v116
    %vm120 = vcmask 261120
    %v122 = vsel %vm120, %v99, 0
    %v125 = vsel %vm120, %v100, 0
    %127 = vmatprep.subr.mxu0 %v102
    %128 = vmatpush1.msra.mxu0 %v101
    %129 = vmatprep.subr.mxu0 %v104
    %130 = vmatpush1.msra.mxu0 %v103
    %131 = vmatprep.subr.mxu0 %v106
    %132 = vmatpush1.msra.mxu0 %v105
    %133 = vmatprep.subr.mxu0 %v108
    %134 = vmatpush1.msra.mxu0 %v107
    %135 = vmatprep.subr.mxu0 0.0
    %136 = vmatpush1.msra.mxu0 0.0
    %137 = vmatprep.subr.mxu0 0.0
    %138 = vmatpush1.msra.mxu0 0.0
    %139 = vmatprep.subr.mxu0 0.0
    %140 = vmatpush1.msra.mxu0 0.0
    %141 = vmatprep.subr.mxu0 0.0
    %142 = vmatpush1.msra.mxu0 0.0
    %143 = vmatprep.subr.mxu0 0.0
    %144 = vmatpush1.msra.mxu0 0.0
    %145 = vmatprep.subr.mxu0 0.0
    %146 = vmatpush1.msra.mxu0 0.0
    %147 = vmatprep.subr.mxu0 0.0
    %148 = vmatpush1.msra.mxu0 0.0
    %149 = vmatprep.subr.mxu0 0.0
    %150 = vmatpush1.msra.mxu0 0.0
    %151 = vmatprep.subr.mxu0 0.0
    %152 = vmatpush1.msra.mxu0 0.0
    %153 = vmatprep.subr.mxu0 0.0
    %154 = vmatpush1.msra.mxu0 0.0
    %155 = vmatprep.subr.mxu0 0.0
    %156 = vmatpush1.msra.mxu0 0.0
    %157 = vmatprep.subr.mxu0 0.0
    %158 = vmatpush1.msra.mxu0 0.0
    %159 = vmatprep.subr.mxu0 0.0
    %160 = vmatpush1.msra.mxu0 0.0
    %161 = vmatprep.subr.mxu0 0.0
    %162 = vmatpush1.msra.mxu0 0.0
    %163 = vmatprep.subr.mxu0 0.0
    %164 = vmatpush1.msra.mxu0 0.0
    %165 = vmatprep.subr.mxu0 0.0
    %166 = vmatpush1.msra.mxu0 0.0
    %167 = vmatprep.subr.mxu0 0.0
    %168 = vmatpush1.msra.mxu0 0.0
    %169 = vmatprep.subr.mxu0 0.0
    %170 = vmatpush1.msra.mxu0 0.0
    %171 = vmatprep.subr.mxu0 0.0
    %172 = vmatpush1.msra.mxu0 0.0
    %173 = vmatprep.subr.mxu0 0.0
    %174 = vmatpush1.msra.mxu0 0.0
    %175 = vmatprep.subr.mxu0 0.0
    %176 = vmatpush1.msra.mxu0 0.0
    %177 = vmatprep.subr.mxu0 0.0
    %178 = vmatpush1.msra.mxu0 0.0
    %179 = vmatprep.subr.mxu0 0.0
    %180 = vmatpush1.msra.mxu0 0.0
    %181 = vmatprep.subr.mxu0 0.0
    %182 = vmatpush1.msra.mxu0 0.0
    %183 = vmatprep.subr.mxu0 0.0
    %184 = vmatpush1.msra.mxu0 0.0
    %185 = vmatprep.subr.mxu0 0.0
    %186 = vmatpush1.msra.mxu0 0.0
    %187 = vmatprep.subr.mxu0 0.0
    %188 = vmatpush1.msra.mxu0 0.0
    %189 = vmatprep.subr.mxu0 0.0
    %190 = vmatpush1.msra.mxu0 0.0
    %191 = vmatprep.mubr.f32.mxu0 0.0
    %192 = vmatmul.mubr.f32.gmra.mrb[0].mxu0 %v122
    %v193 = vpop.f32.mrb[0].mxu0
    %v194 = vadd.f32 %v113, %v193
    %v195 = vpop.f32.mrb[0].mxu0
    %v196 = vadd.f32 %v117, %v195
    %197 = vmatprep.mubr.f32.mxu0 0.0
    %198 = vmatmul.mubr.f32.gmra.mrb[0].mxu0 %v125
    %v199 = vpop.f32.mrb[0].mxu0
    %v200 = vadd.f32 %v113, %v199
    %v201 = vpop.f32.mrb[0].mxu0
    %v202 = vadd.f32 %v117, %v201
    %203 = vdwg.mxu0
    %v204 = vadd.f32 %v194, %v200
    %v205 = vrot.slane %v204, 4
    %v206 = vadd.f32 %v204, %v205
    %v207 = vrot.slane %v206, 2
    %v208 = vadd.f32 %v206, %v207
    %v209 = vrot.slane %v208, 1
    %v210 = vadd.f32 %v208, %v209
    %v211 = vadd.f32 %v196, %v202
    %v212 = vrot.slane %v211, 4
    %v213 = vadd.f32 %v211, %v212
    %v214 = vrot.slane %v213, 2
    %v215 = vadd.f32 %v213, %v214
    %v216 = vrot.slane %v215, 1
    %v217 = vadd.f32 %v215, %v216
    %v218 = vmul.f32 %v210, 0.0625
    %v219 = vmul.f32 %v217, 0.0625
    %v220 = vsub.f32 %v194, %v218
    %v221 = vsub.f32 %v196, %v219
    %v222 = vsub.f32 %v200, %v218
    %v223 = vsub.f32 %v202, %v219
    %v224 = vmul.f32 %v220, %v220
    %v225 = vmul.f32 %v221, %v221
    %v226 = vmul.f32 %v222, %v222
    %v227 = vmul.f32 %v223, %v223
    %v228 = vadd.f32 %v224, %v226
    %v229 = vrot.slane %v228, 4
    %v230 = vadd.f32 %v228, %v229
    %v231 = vrot.slane %v230, 2
    %v232 = vadd.f32 %v230, %v231
    %v233 = vrot.slane %v232, 1
    %v234 = vadd.f32 %v232, %v233
    %v235 = vadd.f32 %v225, %v227
    %v236 = vrot.slane %v235, 4
    %v237 = vadd.f32 %v235, %v236
    %v238 = vrot.slane %v237, 2
    %v239 = vadd.f32 %v237, %v238
    %v240 = vrot.slane %v239, 1
    %v241 = vadd.f32 %v239, %v240
    %v242 = vmul.f32 %v234, 0.0625
    %v243 = vmul.f32 %v241, 0.0625
    %v244 = vadd.f32 %v242, 1e-05
    %v245 = vadd.f32 %v243, 1e-05
    %v246 = vrsqrt.pop %v244
    %v247 = vrsqrt.pop %v245
    %v250 = vcombine.low %v246, %v247
    %v252 = vunpack.c.l.s4 1966171168
    %v253 = vunpack.c.0.s8 %v252
    %v254 = vlaneseq
    %v255 = vshrl.u32 %v254, 7
    %v256 = vsub.s32 %v253, %v255
    %v257 = vrot.slane %v250, %v256
    %v259 = vunpack.c.l.s4 1966171168
    %v260 = vunpack.c.0.s8 %v259
    %v261 = vlaneseq
    %v262 = vshrl.u32 %v261, 7
    %v263 = vsub.s32 %v260, %v262
    %v264 = vrot.slane %v257, %v263
    %v266 = vmul.f32 %v89, %v264
    %v268 = vlaneseq
    %v269 = vshrl.u32 %v268, 7
    %v270 = vsub.s32 0, %v269
    %v271 = vrot.slane %v266, %v270
    %v272 = vlaneseq
    %v273 = vshrl.u32 %v272, 7
    %v274 = vsub.s32 1, %v273
    %v275 = vrot.slane %v266, %v274
    %v278 = vmul.f32 %v218, %v271
    %v279 = vmul.f32 %v219, %v275
    %v282 = vcombine.low %v278, %v279
    %v284 = vunpack.c.l.s4 1966171168
    %v285 = vunpack.c.0.s8 %v284
    %v286 = vlaneseq
    %v287 = vshrl.u32 %v286, 7
    %v288 = vsub.s32 %v285, %v287
    %v289 = vrot.slane %v282, %v288
    %v291 = vunpack.c.l.s4 1966171168
    %v292 = vunpack.c.0.s8 %v291
    %v293 = vlaneseq
    %v294 = vshrl.u32 %v293, 7
    %v295 = vsub.s32 %v292, %v294
    %v296 = vrot.slane %v289, %v295
    %v298 = vsub.f32 %v91, %v296
    %v299 = vmul.f32 %v194, %v271
    %v300 = vmul.f32 %v196, %v275
    %v301 = vmul.f32 %v200, %v271
    %v302 = vmul.f32 %v202, %v275
    %v304 = vlaneseq
    %v305 = vshrl.u32 %v304, 7
    %v306 = vsub.s32 0, %v305
    %v307 = vrot.slane %v298, %v306
    %v308 = vlaneseq
    %v309 = vshrl.u32 %v308, 7
    %v310 = vsub.s32 1, %v309
    %v311 = vrot.slane %v298, %v310
    %v314 = vadd.f32 %v299, %v307
    %v315 = vadd.f32 %v300, %v311
    %v316 = vadd.f32 %v301, %v307
    %v317 = vadd.f32 %v302, %v311
    %v318 = vmax.f32 %v314, 0.0
    %v319 = vmax.f32 %v315, 0.0
    %v320 = vmax.f32 %v316, 0.0
    %v321 = vmax.f32 %v317, 0.0
    %v322 = vld [vmem:[#allocation7] sm:$0xff]
    %v323 = vld [vmem:[#allocation7 + $0x8] sm:$0xff]
    %v324 = vld [vmem:[#allocation7 + $0x10] sm:$0xff]
    %v325 = vld [vmem:[#allocation7 + $0x18] sm:$0xff]
    %v326 = vld [vmem:[#allocation7 + $0x20] sm:$0xff]
    %v327 = vld [vmem:[#allocation7 + $0x28] sm:$0xff]
    %v328 = vld [vmem:[#allocation7 + $0x30] sm:$0xff]
    %v329 = vld [vmem:[#allocation7 + $0x38] sm:$0xff]
    %v330 = vld [vmem:[#allocation7 + $0x40] sm:$0xff]
    %v331 = vld [vmem:[#allocation7 + $0x48] sm:$0xff]
    %v332 = vld [vmem:[#allocation7 + $0x50] sm:$0xff]
    %v333 = vld [vmem:[#allocation7 + $0x58] sm:$0xff]
    %v334 = vld [vmem:[#allocation7 + $0x60] sm:$0xff]
    %v335 = vld [vmem:[#allocation7 + $0x68] sm:$0xff]
    %v336 = vld [vmem:[#allocation7 + $0x70] sm:$0xff]
    %v337 = vld [vmem:[#allocation7 + $0x78] sm:$0xff]
    %v338 = vld [vmem:[#allocation7 + $0x80] sm:$0xff]
    %v339 = vld [vmem:[#allocation7 + $0x88] sm:$0xff]
    %v340 = vld [vmem:[#allocation7 + $0x90] sm:$0xff]
    %v341 = vld [vmem:[#allocation7 + $0x98] sm:$0xff]
    %v342 = vld [vmem:[#allocation7 + $0xa0] sm:$0xff]
    %v343 = vld [vmem:[#allocation7 + $0xa8] sm:$0xff]
    %v344 = vld [vmem:[#allocation7 + $0xb0] sm:$0xff]
    %v345 = vld [vmem:[#allocation7 + $0xb8] sm:$0xff]
    %v346 = vld [vmem:[#allocation7 + $0xc0] sm:$0xff]
    %v347 = vld [vmem:[#allocation7 + $0xc8] sm:$0xff]
    %v348 = vld [vmem:[#allocation7 + $0xd0] sm:$0xff]
    %v349 = vld [vmem:[#allocation7 + $0xd8] sm:$0xff]
    %v350 = vld [vmem:[#allocation7 + $0xe0] sm:$0xff]
    %v351 = vld [vmem:[#allocation7 + $0xe8] sm:$0xff]
    %v352 = vld [vmem:[#allocation7 + $0xf0] sm:$0xff]
    %v353 = vld [vmem:[#allocation7 + $0xf8] sm:$0xff]
    %v354 = vld [vmem:[#allocation7 + $0x100] sm:$0xff]
    %v355 = vld [vmem:[#allocation7 + $0x108] sm:$0xff]
    %v356 = vld [vmem:[#allocation7 + $0x110] sm:$0xff]
    %v357 = vld [vmem:[#allocation7 + $0x118] sm:$0xff]
    %v358 = vld [vmem:[#allocation7 + $0x120] sm:$0xff]
    %v359 = vld [vmem:[#allocation7 + $0x128] sm:$0xff]
    %v360 = vld [vmem:[#allocation7 + $0x130] sm:$0xff]
    %v361 = vld [vmem:[#allocation7 + $0x138] sm:$0xff]
    %v362 = vld [vmem:[#allocation7 + $0x140] sm:$0xff]
    %v363 = vld [vmem:[#allocation7 + $0x148] sm:$0xff]
    %v364 = vld [vmem:[#allocation7 + $0x150] sm:$0xff]
    %v365 = vld [vmem:[#allocation7 + $0x158] sm:$0xff]
    %v366 = vld [vmem:[#allocation7 + $0x160] sm:$0xff]
    %v367 = vld [vmem:[#allocation7 + $0x168] sm:$0xff]
    %v368 = vld [vmem:[#allocation7 + $0x170] sm:$0xff]
    %v369 = vld [vmem:[#allocation7 + $0x178] sm:$0xff]
    %v370 = vld [vmem:[#allocation7 + $0x180] sm:$0xff]
    %v371 = vld [vmem:[#allocation7 + $0x188] sm:$0xff]
    %v372 = vld [vmem:[#allocation7 + $0x190] sm:$0xff]
    %v373 = vld [vmem:[#allocation7 + $0x198] sm:$0xff]
    %v374 = vld [vmem:[#allocation7 + $0x1a0] sm:$0xff]
    %v375 = vld [vmem:[#allocation7 + $0x1a8] sm:$0xff]
    %v376 = vld [vmem:[#allocation7 + $0x1b0] sm:$0xff]
    %v377 = vld [vmem:[#allocation7 + $0x1b8] sm:$0xff]
    %v378 = vld [vmem:[#allocation7 + $0x1c0] sm:$0xff]
    %v379 = vld [vmem:[#allocation7 + $0x1c8] sm:$0xff]
    %v380 = vld [vmem:[#allocation7 + $0x1d0] sm:$0xff]
    %v381 = vld [vmem:[#allocation7 + $0x1d8] sm:$0xff]
    %v382 = vld [vmem:[#allocation7 + $0x1e0] sm:$0xff]
    %v383 = vld [vmem:[#allocation7 + $0x1e8] sm:$0xff]
    %v384 = vld [vmem:[#allocation7 + $0x1f0] sm:$0xff]
    %v385 = vld [vmem:[#allocation7 + $0x1f8] sm:$0xff]
    %v387 = vlaneseq
    %v388 = vshrl.u32 %v387, 7
    %v389 = vsub.s32 0, %v388
    %v390 = vrot.slane %v93, %v389
    %v391 = vlaneseq
    %v392 = vshrl.u32 %v391, 7
    %v393 = vsub.s32 1, %v392
    %v394 = vrot.slane %v93, %v393
    %397 = vmatprep.subr.mxu0 %v323
    %398 = vmatpush1.msra.mxu0 %v322
    %399 = vmatprep.subr.mxu0 %v325
    %400 = vmatpush1.msra.mxu0 %v324
    %401 = vmatprep.subr.mxu0 %v327
    %402 = vmatpush1.msra.mxu0 %v326
    %403 = vmatprep.subr.mxu0 %v329
    %404 = vmatpush1.msra.mxu0 %v328
    %405 = vmatprep.subr.mxu0 %v331
    %406 = vmatpush1.msra.mxu0 %v330
    %407 = vmatprep.subr.mxu0 %v333
    %408 = vmatpush1.msra.mxu0 %v332
    %409 = vmatprep.subr.mxu0 %v335
    %410 = vmatpush1.msra.mxu0 %v334
    %411 = vmatprep.subr.mxu0 %v337
    %412 = vmatpush1.msra.mxu0 %v336
    %413 = vmatprep.subr.mxu0 %v339
    %414 = vmatpush1.msra.mxu0 %v338
    %415 = vmatprep.subr.mxu0 %v341
    %416 = vmatpush1.msra.mxu0 %v340
    %417 = vmatprep.subr.mxu0 %v343
    %418 = vmatpush1.msra.mxu0 %v342
    %419 = vmatprep.subr.mxu0 %v345
    %420 = vmatpush1.msra.mxu0 %v344
    %421 = vmatprep.subr.mxu0 %v347
    %422 = vmatpush1.msra.mxu0 %v346
    %423 = vmatprep.subr.mxu0 %v349
    %424 = vmatpush1.msra.mxu0 %v348
    %425 = vmatprep.subr.mxu0 %v351
    %426 = vmatpush1.msra.mxu0 %v350
    %427 = vmatprep.subr.mxu0 %v353
    %428 = vmatpush1.msra.mxu0 %v352
    %429 = vmatprep.subr.mxu0 %v355
    %430 = vmatpush1.msra.mxu0 %v354
    %431 = vmatprep.subr.mxu0 %v357
    %432 = vmatpush1.msra.mxu0 %v356
    %433 = vmatprep.subr.mxu0 %v359
    %434 = vmatpush1.msra.mxu0 %v358
    %435 = vmatprep.subr.mxu0 %v361
    %436 = vmatpush1.msra.mxu0 %v360
    %437 = vmatprep.subr.mxu0 %v363
    %438 = vmatpush1.msra.mxu0 %v362
    %439 = vmatprep.subr.mxu0 %v365
    %440 = vmatpush1.msra.mxu0 %v364
    %441 = vmatprep.subr.mxu0 %v367
    %442 = vmatpush1.msra.mxu0 %v366
    %443 = vmatprep.subr.mxu0 %v369
    %444 = vmatpush1.msra.mxu0 %v368
    %445 = vmatprep.subr.mxu0 %v371
    %446 = vmatpush1.msra.mxu0 %v370
    %447 = vmatprep.subr.mxu0 %v373
    %448 = vmatpush1.msra.mxu0 %v372
    %449 = vmatprep.subr.mxu0 %v375
    %450 = vmatpush1.msra.mxu0 %v374
    %451 = vmatprep.subr.mxu0 %v377
    %452 = vmatpush1.msra.mxu0 %v376
    %453 = vmatprep.subr.mxu0 %v379
    %454 = vmatpush1.msra.mxu0 %v378
    %455 = vmatprep.subr.mxu0 %v381
    %456 = vmatpush1.msra.mxu0 %v380
    %457 = vmatprep.subr.mxu0 %v383
    %458 = vmatpush1.msra.mxu0 %v382
    %459 = vmatprep.subr.mxu0 %v385
    %460 = vmatpush1.msra.mxu0 %v384
    %461 = vmatprep.mubr.f32.mxu0 %v319
    %462 = vmatmul.mubr.f32.gmra.mrb[0].mxu0 %v318
    %v463 = vpop.f32.mrb[0].mxu0
    %v464 = vadd.f32 %v390, %v463
    %v465 = vpop.f32.mrb[0].mxu0
    %v466 = vadd.f32 %v394, %v465
    %467 = vmatprep.mubr.f32.mxu0 %v321
    %468 = vmatmul.mubr.f32.gmra.mrb[0].mxu0 %v320
    %v469 = vpop.f32.mrb[0].mxu0
    %v470 = vadd.f32 %v390, %v469
    %v471 = vpop.f32.mrb[0].mxu0
    %v472 = vadd.f32 %v394, %v471
    %473 = vdwg.mxu0
    %v474 = vadd.f32 %v464, %v470
    %v475 = vrot.slane %v474, 4
    %v476 = vadd.f32 %v474, %v475
    %v477 = vrot.slane %v476, 2
    %v478 = vadd.f32 %v476, %v477
    %v479 = vrot.slane %v478, 1
    %v480 = vadd.f32 %v478, %v479
    %v481 = vadd.f32 %v466, %v472
    %v482 = vrot.slane %v481, 4
    %v483 = vadd.f32 %v481, %v482
    %v484 = vrot.slane %v483, 2
    %v485 = vadd.f32 %v483, %v484
    %v486 = vrot.slane %v485, 1
    %v487 = vadd.f32 %v485, %v486
    %v488 = vmul.f32 %v480, 0.0625
    %v489 = vmul.f32 %v487, 0.0625
    %v490 = vsub.f32 %v464, %v488
    %v491 = vsub.f32 %v466, %v489
    %v492 = vsub.f32 %v470, %v488
    %v493 = vsub.f32 %v472, %v489
    %v494 = vmul.f32 %v490, %v490
    %v495 = vmul.f32 %v491, %v491
    %v496 = vmul.f32 %v492, %v492
    %v497 = vmul.f32 %v493, %v493
    %v498 = vadd.f32 %v494, %v496
    %v499 = vrot.slane %v498, 4
    %v500 = vadd.f32 %v498, %v499
    %v501 = vrot.slane %v500, 2
    %v502 = vadd.f32 %v500, %v501
    %v503 = vrot.slane %v502, 1
    %v504 = vadd.f32 %v502, %v503
    %v505 = vadd.f32 %v495, %v497
    %v506 = vrot.slane %v505, 4
    %v507 = vadd.f32 %v505, %v506
    %v508 = vrot.slane %v507, 2
    %v509 = vadd.f32 %v507, %v508
    %v510 = vrot.slane %v509, 1
    %v511 = vadd.f32 %v509, %v510
    %v512 = vmul.f32 %v504, 0.0625
    %v513 = vmul.f32 %v511, 0.0625
    %v514 = vadd.f32 %v512, 1e-05
    %v515 = vadd.f32 %v513, 1e-05
    %v516 = vrsqrt.pop %v514
    %v517 = vrsqrt.pop %v515
    %v520 = vcombine.low %v516, %v517
    %v522 = vunpack.c.l.s4 1966171168
    %v523 = vunpack.c.0.s8 %v522
    %v524 = vlaneseq
    %v525 = vshrl.u32 %v524, 7
    %v526 = vsub.s32 %v523, %v525
    %v527 = vrot.slane %v520, %v526
    %v529 = vunpack.c.l.s4 1966171168
    %v530 = vunpack.c.0.s8 %v529
    %v531 = vlaneseq
    %v532 = vshrl.u32 %v531, 7
    %v533 = vsub.s32 %v530, %v532
    %v534 = vrot.slane %v527, %v533
    %v536 = vmul.f32 %v95, %v534
    %v538 = vlaneseq
    %v539 = vshrl.u32 %v538, 7
    %v540 = vsub.s32 0, %v539
    %v541 = vrot.slane %v536, %v540
    %v542 = vlaneseq
    %v543 = vshrl.u32 %v542, 7
    %v544 = vsub.s32 1, %v543
    %v545 = vrot.slane %v536, %v544
    %v548 = vmul.f32 %v488, %v541
    %v549 = vmul.f32 %v489, %v545
    %v552 = vcombine.low %v548, %v549
    %v554 = vunpack.c.l.s4 1966171168
    %v555 = vunpack.c.0.s8 %v554
    %v556 = vlaneseq
    %v557 = vshrl.u32 %v556, 7
    %v558 = vsub.s32 %v555, %v557
    %v559 = vrot.slane %v552, %v558
    %v561 = vunpack.c.l.s4 1966171168
    %v562 = vunpack.c.0.s8 %v561
    %v563 = vlaneseq
    %v564 = vshrl.u32 %v563, 7
    %v565 = vsub.s32 %v562, %v564
    %v566 = vrot.slane %v559, %v565
    %v568 = vsub.f32 %v97, %v566
    %v569 = vmul.f32 %v464, %v541
    %v570 = vmul.f32 %v466, %v545
    %v571 = vmul.f32 %v470, %v541
    %v572 = vmul.f32 %v472, %v545
    %v574 = vlaneseq
    %v575 = vshrl.u32 %v574, 7
    %v576 = vsub.s32 0, %v575
    %v577 = vrot.slane %v568, %v576
    %v578 = vlaneseq
    %v579 = vshrl.u32 %v578, 7
    %v580 = vsub.s32 1, %v579
    %v581 = vrot.slane %v568, %v580
    %v584 = vadd.f32 %v569, %v577
    %v585 = vadd.f32 %v570, %v581
    %v586 = vadd.f32 %v571, %v577
    %v587 = vadd.f32 %v572, %v581
    %v588 = vmax.f32 %v584, 0.0
    %v589 = vmax.f32 %v585, 0.0
    %v590 = vmax.f32 %v586, 0.0
    %v591 = vmax.f32 %v587, 0.0
    %v592 = vld [vmem:[#allocation8] sm:$0xff]
    %v593 = vld [vmem:[#allocation8 + $0x8] sm:$0xff]
    %v594 = vld [vmem:[#allocation8 + $0x10] sm:$0xff]
    %v595 = vld [vmem:[#allocation8 + $0x18] sm:$0xff]
    %v596 = vld [vmem:[#allocation8 + $0x20] sm:$0xff]
    %v597 = vld [vmem:[#allocation8 + $0x28] sm:$0xff]
    %v598 = vld [vmem:[#allocation8 + $0x30] sm:$0xff]
    %v599 = vld [vmem:[#allocation8 + $0x38] sm:$0xff]
    %v600 = vld [vmem:[#allocation8 + $0x40] sm:$0xff]
    %v601 = vld [vmem:[#allocation8 + $0x48] sm:$0xff]
    %v602 = vld [vmem:[#allocation8 + $0x50] sm:$0xff]
    %v603 = vld [vmem:[#allocation8 + $0x58] sm:$0xff]
    %v604 = vld [vmem:[#allocation8 + $0x60] sm:$0xff]
    %v605 = vld [vmem:[#allocation8 + $0x68] sm:$0xff]
    %v606 = vld [vmem:[#allocation8 + $0x70] sm:$0xff]
    %v607 = vld [vmem:[#allocation8 + $0x78] sm:$0xff]
    %v608 = vld [vmem:[#allocation8 + $0x80] sm:$0xff]
    %v609 = vld [vmem:[#allocation8 + $0x88] sm:$0xff]
    %v610 = vld [vmem:[#allocation8 + $0x90] sm:$0xff]
    %v611 = vld [vmem:[#allocation8 + $0x98] sm:$0xff]
    %v612 = vld [vmem:[#allocation8 + $0xa0] sm:$0xff]
    %v613 = vld [vmem:[#allocation8 + $0xa8] sm:$0xff]
    %v614 = vld [vmem:[#allocation8 + $0xb0] sm:$0xff]
    %v615 = vld [vmem:[#allocation8 + $0xb8] sm:$0xff]
    %v616 = vld [vmem:[#allocation8 + $0xc0] sm:$0xff]
    %v617 = vld [vmem:[#allocation8 + $0xc8] sm:$0xff]
    %v618 = vld [vmem:[#allocation8 + $0xd0] sm:$0xff]
    %v619 = vld [vmem:[#allocation8 + $0xd8] sm:$0xff]
    %v620 = vld [vmem:[#allocation8 + $0xe0] sm:$0xff]
    %v621 = vld [vmem:[#allocation8 + $0xe8] sm:$0xff]
    %v622 = vld [vmem:[#allocation8 + $0xf0] sm:$0xff]
    %v623 = vld [vmem:[#allocation8 + $0xf8] sm:$0xff]
    %624 = vmatprep.subr.mxu0 0.0
    %625 = vmatpush1.msra.mxu0 %v592
    %626 = vmatprep.subr.mxu0 0.0
    %627 = vmatpush1.msra.mxu0 %v593
    %628 = vmatprep.subr.mxu0 0.0
    %629 = vmatpush1.msra.mxu0 %v594
    %630 = vmatprep.subr.mxu0 0.0
    %631 = vmatpush1.msra.mxu0 %v595
    %632 = vmatprep.subr.mxu0 0.0
    %633 = vmatpush1.msra.mxu0 %v596
    %634 = vmatprep.subr.mxu0 0.0
    %635 = vmatpush1.msra.mxu0 %v597
    %636 = vmatprep.subr.mxu0 0.0
    %637 = vmatpush1.msra.mxu0 %v598
    %638 = vmatprep.subr.mxu0 0.0
    %639 = vmatpush1.msra.mxu0 %v599
    %640 = vmatprep.subr.mxu0 0.0
    %641 = vmatpush1.msra.mxu0 %v600
    %642 = vmatprep.subr.mxu0 0.0
    %643 = vmatpush1.msra.mxu0 %v601
    %644 = vmatprep.subr.mxu0 0.0
    %645 = vmatpush1.msra.mxu0 %v602
    %646 = vmatprep.subr.mxu0 0.0
    %647 = vmatpush1.msra.mxu0 %v603
    %648 = vmatprep.subr.mxu0 0.0
    %649 = vmatpush1.msra.mxu0 %v604
    %650 = vmatprep.subr.mxu0 0.0
    %651 = vmatpush1.msra.mxu0 %v605
    %652 = vmatprep.subr.mxu0 0.0
    %653 = vmatpush1.msra.mxu0 %v606
    %654 = vmatprep.subr.mxu0 0.0
    %655 = vmatpush1.msra.mxu0 %v607
    %656 = vmatprep.subr.mxu0 0.0
    %657 = vmatpush1.msra.mxu0 %v608
    %658 = vmatprep.subr.mxu0 0.0
    %659 = vmatpush1.msra.mxu0 %v609
    %660 = vmatprep.subr.mxu0 0.0
    %661 = vmatpush1.msra.mxu0 %v610
    %662 = vmatprep.subr.mxu0 0.0
    %663 = vmatpush1.msra.mxu0 %v611
    %664 = vmatprep.subr.mxu0 0.0
    %665 = vmatpush1.msra.mxu0 %v612
    %666 = vmatprep.subr.mxu0 0.0
    %667 = vmatpush1.msra.mxu0 %v613
    %668 = vmatprep.subr.mxu0 0.0
    %669 = vmatpush1.msra.mxu0 %v614
    %670 = vmatprep.subr.mxu0 0.0
    %671 = vmatpush1.msra.mxu0 %v615
    %672 = vmatprep.subr.mxu0 0.0
    %673 = vmatpush1.msra.mxu0 %v616
    %674 = vmatprep.subr.mxu0 0.0
    %675 = vmatpush1.msra.mxu0 %v617
    %676 = vmatprep.subr.mxu0 0.0
    %677 = vmatpush1.msra.mxu0 %v618
    %678 = vmatprep.subr.mxu0 0.0
    %679 = vmatpush1.msra.mxu0 %v619
    %680 = vmatprep.subr.mxu0 0.0
    %681 = vmatpush1.msra.mxu0 %v620
    %682 = vmatprep.subr.mxu0 0.0
    %683 = vmatpush1.msra.mxu0 %v621
    %684 = vmatprep.subr.mxu0 0.0
    %685 = vmatpush1.msra.mxu0 %v622
    %686 = vmatprep.subr.mxu0 0.0
    %687 = vmatpush1.msra.mxu0 %v623
    %688 = vmatprep.mubr.f32.mxu0 %v589
    %689 = vmatmul.mubr.f32.gmra.mrb[0].mxu0 %v588
    %v690 = vpop.f32.mrb[0].mxu0
    %v691 = vadd.f32 %v98, %v690
    %v692 = vpop.f32.mrb[0].mxu0
    %693 = vmatprep.mubr.f32.mxu0 %v591
    %694 = vmatmul.mubr.f32.gmra.mrb[0].mxu0 %v590
    %v695 = vpop.f32.mrb[0].mxu0
    %v696 = vadd.f32 %v98, %v695
    %v697 = vpop.f32.mrb[0].mxu0
    %698 = vdwg.mxu0
    %699 = vst [vmem:[#allocation11] sm:$0xff] %v691
    %700 = vst [vmem:[#allocation11 + $0x8] sm:$0xff] %v696
    // Predicated region
    $region42: #{tpu_custom_call.1} parent=1 // pred_check
      _
    $region43: #{tpu_custom_call.1} parent=1 // pred_check_branch
      %702 = sbr.rel (0) target = $region45
    $region44: #{tpu_custom_call.1} parent=1 // pred_region
      %s704 = ssub.s32 256, 256
      %705 = vsyncadd [#allocation4], %s704
      %s706 = sshll.u32 [#allocation11], 4
      %s707 = int_to_ptr.vmem [resolvable:$true] %s706
      %712 = dma.vmem_to_hbm [thread:$0]  %s707, 256, %s5, [#allocation4], 128, 128, 8
    $region45: #{tpu_custom_call.1} parent=1 // pred_fallthru
      _
    // Predicated region
    $region46: #{tpu_custom_call.1} parent=1 // pred_check
      _
    $region47: #{tpu_custom_call.1} parent=1 // pred_check_branch
      %714 = sbr.rel (0) target = $region49
    $region48: #{tpu_custom_call.1} parent=1 // pred_region
      %715 = dma.done [#allocation4], 256
    $region49: #{tpu_custom_call.1} parent=1 // pred_fallthru
      _
    %716 = vsyncpa [#allocation3], 1
    %717 = vsyncpa [#allocation6], 1
    %718 = vsyncpa [#allocation9], 1
    %719 = vsyncpa [#allocation4], 1

</llo_original>
